<compile_context>
chip_gen: v6e
topology: v6e:2x2x1
jax: 0.10.0
libtpu: 0.0.40
codegen_flags: <defaults>
</compile_context>

<pallas_src>
import jax
import jax.numpy as jnp
from jax.experimental import pallas as pl
from jax.experimental.pallas import tpu as pltpu


def _attnpool_fused_kernel(x_ref, w_ref, posc_ref, post_ref, o_ref):
    """Fused AttentionPool2d (dense_clip) forward for one batch block.

    x_ref:    (bb, C, HW)      spatial tokens, channel-major (no wrapper transpose)
    w_ref:    (C, Dout)        folded projection W = Wv^T @ Wc^T, bf16
    posc_ref: (1, Dout)        pre-projected CLS positional row   (f32)
    post_ref: (HW, Dout)       pre-projected token positional rows (f32)
    o_ref:    (HW+1, bb*Dout)  sequence-major output columns for this batch block
    """
    bb, c, hw = x_ref.shape
    dout = w_ref.shape[-1]

    # token<->channel relayout in VMEM (overlapped by the pipeline): one 2-D
    # lane<->sublane transpose per batch element, stacked along sublanes so the
    # MXU sees a single (bb*HW, C) @ (C, Dout) GEMM.
    xts = [x_ref[j].T for j in range(bb)]                           # each (HW, C)
    xm = xts[0] if bb == 1 else jnp.concatenate(xts, axis=0)        # (bb*HW, C)
    xm = xm.astype(jnp.bfloat16)                                    # bf16 MXU operand

    y = jnp.dot(xm, w_ref[...], preferred_element_type=jnp.float32)  # (bb*HW, Dout) f32

    pos_cls = posc_ref[...]                                         # (1, Dout)  f32
    pos_tok = post_ref[...]                                         # (HW, Dout) f32
    inv_hw = 1.0 / hw

    # Build the full per-batch (HW+1, Dout) tile in registers (CLS row first), then
    # place tiles side-by-side on lanes (Dout-aligned) and store ONCE, unsliced.
    cols = []
    for j in range(bb):
        yj = y[j * hw:(j + 1) * hw]                                  # (HW, Dout)
        cls = jnp.sum(yj, axis=0, keepdims=True) * inv_hw + pos_cls  # mean commutes
        cols.append(jnp.concatenate([cls, yj + pos_tok], axis=0))    # (HW+1, Dout)

    tile = cols[0] if bb == 1 else jnp.concatenate(cols, axis=1)     # (HW+1, bb*Dout)
    o_ref[...] = tile.astype(o_ref.dtype)


def _pick_batch_block(b, hw, c, dout, x_bytes, out_bytes):
    """Batch elements per grid step: fill the MXU with bb*HW GEMM rows while the
    double-buffered per-step working set stays inside a per-generation VMEM budget."""
    try:
        cap = int(pltpu.get_tpu_info().vmem_capacity_bytes)
    except Exception:
        cap = 64 * 1024 * 1024                        # conservative (v7x-sized) fallback

    budget = max(8 << 20, min(cap // 4, 48 << 20))    # per-step block working set
    target_rows = 1024 if cap >= (96 << 20) else 512  # v5e/v6e (128 MiB) vs v7x (64 MiB)

    bb = max(1, min(pl.cdiv(target_rows, hw), 16, b))  # 16 caps the static unroll
    if b >= 2:
        bb = min(bb, pl.cdiv(b, 2))                    # keep grid length >= 2 (2 TCs on v7x)

    def rnd(v, m):
        return pl.cdiv(v, m) * m

    def step_bytes(k):
        x_blk = k * rnd(c, 8) * rnd(hw, 128) * x_bytes
        o_blk = rnd(hw + 1, 8) * k * rnd(dout, 128) * out_bytes
        # grid-invariant inputs (weight bf16 + pos rows f32); counted x2 because they
        # are still pipeline double-buffered (see Buffered(1) TODO below).
        resident = rnd(c, 8) * rnd(dout, 128) * 2 + rnd(hw + 1, 8) * rnd(dout, 128) * 4
        scratch = k * rnd(hw, 8) * (rnd(c, 128) * 2 + rnd(dout, 128) * 4)  # xm + y values
        return 2 * (x_blk + o_blk) + 2 * resident + scratch

    while bb > 1 and step_bytes(bb) > budget:
        bb -= 1
    vmem_limit = int(min(max(2 * step_bytes(bb), 16 << 20), int(cap * 0.75)))
    return bb, vmem_limit


def attention_pool_2d(x_nchw, params):
    b, c, gh, gw = x_nchw.shape
    hw = gh * gw

    # NCHW -> (B, C, HW): contiguous dim-merge only (free).  NO wrapper transpose --
    # the relayout happens on VMEM tiles inside the kernel instead of as an HBM pass.
    x_bcs = x_nchw.reshape(b, c, hw)

    pos = params["positional_embedding"].astype(jnp.float32)   # (HW+1, C)
    wv = params["v_proj_w"].astype(jnp.float32)                # (C, C)    torch (out, in)
    bv = params["v_proj_b"].astype(jnp.float32)                # (C,)
    wc = params["c_proj_w"].astype(jnp.float32)                # (Dout, C)
    bc = params["c_proj_b"].astype(jnp.float32)                # (Dout,)

    # Fold v_proj ∘ c_proj (no nonlinearity in between) and pre-project the positional
    # embedding -- all in f32; only the folded weight is then cast to bf16 for the MXU.
    w_fold = wv.T @ wc.T                                       # (C, Dout)   f32
    b_fold = bv @ wc.T + bc                                    # (Dout,)     f32
    pos_proj = pos @ w_fold + b_fold                           # (HW+1, Dout) f32
    dout = w_fold.shape[1]
    w_bf16 = w_fold.astype(jnp.bfloat16)
    pos_cls = pos_proj[0:1]                                    # (1, Dout)
    pos_tok = pos_proj[1:]                                     # (HW, Dout)

    bb, vmem_limit = _pick_batch_block(
        b, hw, c, dout, x_bcs.dtype.itemsize, x_nchw.dtype.itemsize)

    # Padded batch tail (cdiv grid) instead of forcing bb to divide B.
    b_pad = pl.cdiv(b, bb) * bb
    if dout % 128 != 0:
        # Keep output stores lane-aligned: fall back to one full-width output block
        # (real CLIP Dout is a multiple of 128, so this path is for toy dims only).
        bb = b_pad
    if b_pad != b:
        x_bcs = jnp.pad(x_bcs, ((0, b_pad - b), (0, 0), (0, 0)))

    # TODO(synk): pipeline_mode=pl.Buffered(1) on the two grid-invariant inputs would
    # halve their VMEM footprint; omitted here to stay on guaranteed-lowering APIs.
    out2d = pl.pallas_call(
        _attnpool_fused_kernel,
        out_shape=jax.ShapeDtypeStruct((hw + 1, b_pad * dout), x_nchw.dtype),
        grid=(b_pad // bb,),
        in_specs=[
            pl.BlockSpec((bb, c, hw), lambda i: (i, 0, 0)),    # per-step batch block
            pl.BlockSpec((c, dout), lambda i: (0, 0)),         # folded bf16 weight (resident)
            pl.BlockSpec((1, dout), lambda i: (0, 0)),         # projected CLS pos row
            pl.BlockSpec((hw, dout), lambda i: (0, 0)),        # projected token pos rows
        ],
        out_specs=pl.BlockSpec((hw + 1, bb * dout), lambda i: (0, i)),
        compiler_params=pltpu.CompilerParams(
            dimension_semantics=("parallel",),
            vmem_limit_bytes=vmem_limit,
        ),
    )(x_bcs, w_bf16, pos_cls, pos_tok)

    if b_pad != b:
        out2d = out2d[:, : b * dout]                 # drop padded batch columns
    # (HW+1, B*Dout) -> (HW+1, B, Dout) is a free contiguous split -- no HBM transpose.
    return out2d.reshape(hw + 1, b, dout)

    # TODO(synk): for HW not a multiple of 8 (e.g. CLIP's 7x7=49) the in-kernel sublane
    # concat/slice is unaligned; zero-padding HW to a multiple of 8 in the producer
    # (CLS stays sum/HW) would remove those shuffles.


def _reference(x_nchw, params):
    """Pure-JAX mirror of the PyTorch forward (dense_clip=True, mask=None), unfused f32."""
    b, c, gh, gw = x_nchw.shape
    x = jnp.transpose(x_nchw.reshape(b, c, gh * gw), (2, 0, 1))   # (HW, B, C)
    x = jnp.concatenate([x.mean(axis=0, keepdims=True), x], axis=0)
    x = x + params["positional_embedding"][:, None, :]
    x = x @ params["v_proj_w"].T + params["v_proj_b"]
    x = x @ params["c_proj_w"].T + params["c_proj_b"]
    return x


if __name__ == "__main__":
    # Module hyperparameters (small, consistent with AttentionPool2d.__init__).
    # output_dim=128 keeps the output blocks lane-dense/aligned (real CLIP uses >=512).
    spacial_dim, embed_dim, num_heads, output_dim = 4, 32, 4, 128
    batch = 2

    key = jax.random.PRNGKey(0)
    ks = jax.random.split(key, 8)
    params = {
        "positional_embedding": jax.random.normal(
            ks[0], (spacial_dim ** 2 + 1, embed_dim), jnp.float32) / embed_dim ** 0.5,
        "v_proj_w": jax.random.normal(ks[1], (embed_dim, embed_dim), jnp.float32) * embed_dim ** -0.5,
        "v_proj_b": jax.random.normal(ks[2], (embed_dim,), jnp.float32) * 0.02,
        "c_proj_w": jax.random.normal(ks[3], (output_dim, embed_dim), jnp.float32) * embed_dim ** -0.5,
        "c_proj_b": jax.random.normal(ks[4], (output_dim,), jnp.float32) * 0.02,
        # q_proj / k_proj exist in __init__ but are unused on the dense_clip=True forward path.
        "q_proj_w": jax.random.normal(ks[5], (embed_dim, embed_dim), jnp.float32) * embed_dim ** -0.5,
        "k_proj_w": jax.random.normal(ks[6], (embed_dim, embed_dim), jnp.float32) * embed_dim ** -0.5,
    }

    # TODO(synk): mask path (F.interpolate + key_padding_mask), the bicubic positional-
    # embedding resize (only hit when input spatial != spacial_dim), and the non-dense
    # multi-head-attention branch (unreachable: dense_clip is hardcoded True) are not
    # implemented.

    x = jax.random.normal(ks[7], (batch, embed_dim, spacial_dim, spacial_dim), jnp.float32)

    fwd = jax.jit(attention_pool_2d)
    out = jax.block_until_ready(fwd(x, params))
    ref = _reference(x, params)

    assert out.shape == (spacial_dim ** 2 + 1, batch, output_dim), out.shape
    # bf16 MXU operands (vs the unfused f32 reference) -> loose tolerance.
    max_err = float(jnp.max(jnp.abs(out - ref)))
    assert jnp.allclose(out, ref, atol=6e-2, rtol=6e-2), max_err
    print("KERNEL_OK")
</pallas_src>

<mosaic_0001>
module attributes {stable_mosaic.version = 11 : i64} {
  func.func @_attnpool_fused_kernel(%arg0: i32, %arg1: memref<1x32x16xf32, #tpu.memory_space<vmem>>, %arg2: memref<32x128xbf16, #tpu.memory_space<vmem>>, %arg3: memref<1x128xf32, #tpu.memory_space<vmem>>, %arg4: memref<16x128xf32, #tpu.memory_space<vmem>>, %arg5: memref<17x128xf32, #tpu.memory_space<vmem>>) attributes {dimension_semantics = [#tpu.dimension_semantics<parallel>], iteration_bounds = array<i64: 2>, scalar_prefetch = 0 : i64, scratch_operands = 0 : i64, tpu.core_type = #tpu.core_type<tc>, window_params = [{transform_indices = @transform_0, window_bounds = array<i64: 1, 32, 16>}, {pipeline_mode = #tpu.pipeline_mode<synchronous>, transform_indices = @transform_1, window_bounds = array<i64: 32, 128>}, {pipeline_mode = #tpu.pipeline_mode<synchronous>, transform_indices = @transform_2, window_bounds = array<i64: 1, 128>}, {pipeline_mode = #tpu.pipeline_mode<synchronous>, transform_indices = @transform_3, window_bounds = array<i64: 16, 128>}, {transform_indices = @transform_4, window_bounds = array<i64: 17, 128>}]} {
    %c0 = arith.constant 0 : index
    %c0_0 = arith.constant 0 : index
    %c0_1 = arith.constant 0 : index
    %0 = vector.load %arg1[%c0, %c0_0, %c0_1] : memref<1x32x16xf32, #tpu.memory_space<vmem>>, vector<1x32x16xf32>
    %1 = vector.shape_cast %0 : vector<1x32x16xf32> to vector<32x16xf32>
    %2 = tpu.transpose %1, [1, 0] : vector<32x16xf32> -> vector<16x32xf32>
    %3 = arith.truncf %2 : vector<16x32xf32> to vector<16x32xbf16>
    %c0_2 = arith.constant 0 : index
    %c0_3 = arith.constant 0 : index
    %4 = vector.load %arg2[%c0_2, %c0_3] : memref<32x128xbf16, #tpu.memory_space<vmem>>, vector<32x128xbf16>
    %cst = arith.constant dense<0.000000e+00> : vector<16x128xf32>
    %5 = tpu.matmul %3, %4, %cst {dimension_numbers = #tpu.dot_dimension_numbers<[1], [0], [0], [1], [0, 0, 1, 1], [], []>} : vector<16x32xbf16>, vector<32x128xbf16>, vector<16x128xf32> -> vector<16x128xf32>
    %c0_4 = arith.constant 0 : index
    %c0_5 = arith.constant 0 : index
    %6 = vector.load %arg3[%c0_4, %c0_5] : memref<1x128xf32, #tpu.memory_space<vmem>>, vector<1x128xf32>
    %c0_6 = arith.constant 0 : index
    %c0_7 = arith.constant 0 : index
    %7 = vector.load %arg4[%c0_6, %c0_7] : memref<16x128xf32, #tpu.memory_space<vmem>>, vector<16x128xf32>
    %cst_8 = arith.constant dense<0.000000e+00> : vector<128xf32>
    %8 = vector.multi_reduction <add>, %5, %cst_8 [0] : vector<16x128xf32> to vector<128xf32>
    %9 = vector.shape_cast %8 : vector<128xf32> to vector<1x128xf32>
    %cst_9 = arith.constant 6.250000e-02 : f32
    %10 = vector.broadcast %cst_9 : f32 to vector<1x128xf32>
    %11 = arith.mulf %9, %10 : vector<1x128xf32>
    %12 = arith.addf %11, %6 : vector<1x128xf32>
    %13 = arith.addf %5, %7 : vector<16x128xf32>
    %14 = tpu.concatenate %12, %13 in 0 : vector<1x128xf32>, vector<16x128xf32> -> vector<17x128xf32>
    %c0_10 = arith.constant 0 : index
    %c0_11 = arith.constant 0 : index
    %15 = vector.load %arg5[%c0_10, %c0_11] : memref<17x128xf32, #tpu.memory_space<vmem>>, vector<17x128xf32>
    tpu.vector_store %arg5[%c0_10, %c0_11], %14 {strides = array<i32>} : memref<17x128xf32, #tpu.memory_space<vmem>>, vector<17x128xf32>,
    return
  }
  func.func @transform_0(%arg0: i32) -> (i32, i32, i32) {
    %c0_i32 = arith.constant 0 : i32
    %c0_i32_0 = arith.constant 0 : i32
    %c0_i32_1 = arith.constant 0 : i32
    return %arg0, %c0_i32, %c0_i32_0 : i32, i32, i32
  }
  func.func @transform_1(%arg0: i32) -> (i32, i32) {
    %c0_i32 = arith.constant 0 : i32
    %c0_i32_0 = arith.constant 0 : i32
    %c0_i32_1 = arith.constant 0 : i32
    return %c0_i32, %c0_i32_0 : i32, i32
  }
  func.func @transform_2(%arg0: i32) -> (i32, i32) {
    %c0_i32 = arith.constant 0 : i32
    %c0_i32_0 = arith.constant 0 : i32
    %c0_i32_1 = arith.constant 0 : i32
    return %c0_i32, %c0_i32_0 : i32, i32
  }
  func.func @transform_3(%arg0: i32) -> (i32, i32) {
    %c0_i32 = arith.constant 0 : i32
    %c0_i32_0 = arith.constant 0 : i32
    %c0_i32_1 = arith.constant 0 : i32
    return %c0_i32, %c0_i32_0 : i32, i32
  }
  func.func @transform_4(%arg0: i32) -> (i32, i32) {
    %c0_i32 = arith.constant 0 : i32
    %c0_i32_0 = arith.constant 0 : i32
    return %c0_i32, %arg0 : i32, i32
  }
}

</mosaic_0001>

<llo_original>
// kernel: attention_pool_2d.1
$region0: #{attention_pool_2d.1}
  #allocation0 [shape = 'u32[]', space=smem, size = 0x4, offset = 0x4, fixed_abs, tag = 'smem constant byte address 0x4 - core index']
  #allocation1 [shape = 'u32[144,128]{1,0:T(1,128)}', space=vmem, size = 0x12000, scoped, tag = 'internal scratch']
  %s0 = inlined_call_operand.vmem [shape: f32[2,32,16], index: 0, kind: input, shape index: {}]
  %s1 = inlined_call_operand.vmem [shape: bf16[32,128], index: 1, kind: input, shape index: {}]
  %s2 = inlined_call_operand.vmem [shape: f32[1,128], index: 2, kind: input, shape index: {}]
  %s3 = inlined_call_operand.vmem [shape: f32[16,128], index: 3, kind: input, shape index: {}]
  %s4 = inlined_call_operand.vmem [shape: f32[17,256], index: 4, kind: output, shape index: {}]
  %s5 = sld [smem:[#allocation0]]
  $region83: #{attention_pool_2d.1} parent=0
    _
  %s7 = ssub.s32 1, %s5
  %s8 = scalar_select 0, %s7, %s5
  $region1: #{attention_pool_2d.1} parent=0
    #allocation2 [shape = 'u8[24576]{0}', space=vmem, size = 0x6000, scoped, tag = 'output window, operand 0']
    loop: start=0, step=1, limit=4
    $region2: #{attention_pool_2d.1} parent=1 // loop_pre_header
      _
    $region3: #{attention_pool_2d.1} parent=1 // loop_header
      %s10 = sphi 0, %s14
      %p11 = scmp.ge.s32.totalorder %s10, 4
      %s20 = sphi 0, %s22
      %s23 = sphi 0, %s20
      %s24 = sphi 0, %s23
      %s40 = sphi 0, %s24
      %s44 = sphi 0, %s44
      %s46 = sphi 0, %s44
      %s47 = sphi 0, %s46
      %s61 = sphi 0, %s47
      %s65 = sphi 0, %s65
      %s67 = sphi 0, %s65
      %s68 = sphi 0, %s67
      %s82 = sphi 0, %s68
      %s86 = sphi 0, %s86
      %s88 = sphi 0, %s86
      %s89 = sphi 0, %s88
      %s103 = sphi 0, %s89
      %s109 = sphi 0, %s111
      %s112 = sphi 0, %s109
      %s113 = sphi 0, %s112
      %s129 = sphi 0, %s113
    $region4: #{attention_pool_2d.1} parent=1 // loop_header_branch
      %13 = sbr.rel (%p11) target = $region8
    $region5: #{attention_pool_2d.1} parent=1 // loop_body
      %s15 = ssub.s32 %s10, 1
      %s16 = ssub.s32 %s10, 2
      %s17 = sadd.s32 %s10, 1
      %s18 = ssub.s32 %s10, %s17
      %p19 = scmp.eq.s32.totalorder %s18, 0
      %s21 = sadd.s32 %s20, 1
      %s22 = scalar_select %p19, %s20, %s21
      %p25 = pneg %p19
      %p26 = scmp.eq.s32.totalorder %s10, 1
      %p27 = por %p25, %p26
      %p28 = scmp.ne.s32.totalorder %s20, %s23
      %p29 = scmp.eq.s32.totalorder %s10, 0
      %p30 = por %p28, %p29
      %p31 = scmp.ne.s32.totalorder %s20, %s23
      %p32 = scmp.eq.s32.totalorder %s15, 1
      %p33 = por %p31, %p32
      %p34 = scmp.ne.s32.totalorder %s23, %s24
      %p35 = scmp.eq.s32.totalorder %s15, 0
      %p36 = por %p34, %p35
      %p37 = scmp.ne.s32.totalorder %s23, %s24
      %p38 = scmp.eq.s32.totalorder %s16, 1
      %p39 = por %p37, %p38
      %p41 = scmp.ne.s32.totalorder %s24, %s40
      %p42 = scmp.eq.s32.totalorder %s16, 0
      %p43 = por %p41, %p42
      %s45 = sadd.s32 %s44, 1
      %p48 = scmp.eq.s32.totalorder %s10, 1
      %p49 = scmp.ne.s32.totalorder %s44, %s46
      %p50 = scmp.eq.s32.totalorder %s10, 0
      %p51 = por %p49, %p50
      %p52 = scmp.ne.s32.totalorder %s44, %s46
      %p53 = scmp.eq.s32.totalorder %s15, 1
      %p54 = por %p52, %p53
      %p55 = scmp.ne.s32.totalorder %s46, %s47
      %p56 = scmp.eq.s32.totalorder %s15, 0
      %p57 = por %p55, %p56
      %p58 = scmp.ne.s32.totalorder %s46, %s47
      %p59 = scmp.eq.s32.totalorder %s16, 1
      %p60 = por %p58, %p59
      %p62 = scmp.ne.s32.totalorder %s47, %s61
      %p63 = scmp.eq.s32.totalorder %s16, 0
      %p64 = por %p62, %p63
      %s66 = sadd.s32 %s65, 1
      %p69 = scmp.eq.s32.totalorder %s10, 1
      %p70 = scmp.ne.s32.totalorder %s65, %s67
      %p71 = scmp.eq.s32.totalorder %s10, 0
      %p72 = por %p70, %p71
      %p73 = scmp.ne.s32.totalorder %s65, %s67
      %p74 = scmp.eq.s32.totalorder %s15, 1
      %p75 = por %p73, %p74
      %p76 = scmp.ne.s32.totalorder %s67, %s68
      %p77 = scmp.eq.s32.totalorder %s15, 0
      %p78 = por %p76, %p77
      %p79 = scmp.ne.s32.totalorder %s67, %s68
      %p80 = scmp.eq.s32.totalorder %s16, 1
      %p81 = por %p79, %p80
      %p83 = scmp.ne.s32.totalorder %s68, %s82
      %p84 = scmp.eq.s32.totalorder %s16, 0
      %p85 = por %p83, %p84
      %s87 = sadd.s32 %s86, 1
      %p90 = scmp.eq.s32.totalorder %s10, 1
      %p91 = scmp.ne.s32.totalorder %s86, %s88
      %p92 = scmp.eq.s32.totalorder %s10, 0
      %p93 = por %p91, %p92
      %p94 = scmp.ne.s32.totalorder %s86, %s88
      %p95 = scmp.eq.s32.totalorder %s15, 1
      %p96 = por %p94, %p95
      %p97 = scmp.ne.s32.totalorder %s88, %s89
      %p98 = scmp.eq.s32.totalorder %s15, 0
      %p99 = por %p97, %p98
      %p100 = scmp.ne.s32.totalorder %s88, %s89
      %p101 = scmp.eq.s32.totalorder %s16, 1
      %p102 = por %p100, %p101
      %p104 = scmp.ne.s32.totalorder %s89, %s103
      %p105 = scmp.eq.s32.totalorder %s16, 0
      %p106 = por %p104, %p105
      %s107 = ssub.s32 %s10, %s17
      %p108 = scmp.eq.s32.totalorder %s107, 0
      %s110 = sadd.s32 %s109, 1
      %s111 = scalar_select %p108, %s109, %s110
      %p114 = pneg %p108
      %p115 = scmp.eq.s32.totalorder %s10, 1
      %p116 = por %p114, %p115
      %p117 = scmp.ne.s32.totalorder %s109, %s112
      %p118 = scmp.eq.s32.totalorder %s10, 0
      %p119 = por %p117, %p118
      %p120 = scmp.ne.s32.totalorder %s109, %s112
      %p121 = scmp.eq.s32.totalorder %s15, 1
      %p122 = por %p120, %p121
      %p123 = scmp.ne.s32.totalorder %s112, %s113
      %p124 = scmp.eq.s32.totalorder %s15, 0
      %p125 = por %p123, %p124
      %p126 = scmp.ne.s32.totalorder %s112, %s113
      %p127 = scmp.eq.s32.totalorder %s16, 1
      %p128 = por %p126, %p127
      %p130 = scmp.ne.s32.totalorder %s113, %s129
      %p131 = scmp.eq.s32.totalorder %s16, 0
      %p132 = por %p130, %p131
      %p133 = scmp.le.s32.totalorder 1, %s10
      %p134 = scmp.lt.s32.totalorder %s10, 3
      %p135 = pnand %p133, %p134
      %p136 = pneg %p135
      // Predicated region
      $region9: #{attention_pool_2d.1} parent=5 // pred_check
        _
      $region10: #{attention_pool_2d.1} parent=5 // pred_check_branch
        %138 = sbr.rel (%p135) target = $region12
      $region11: #{attention_pool_2d.1} parent=5 // pred_region
        %s139 = ssub.s32 %s10, 1
        // Predicated region
        $region13: #{attention_pool_2d.1} parent=11 // pred_check
          %p140 = pneg %p57
        $region14: #{attention_pool_2d.1} parent=11 // pred_check_branch
          %142 = sbr.rel (%p140) target = $region16
        $region15: #{attention_pool_2d.1} parent=11 // pred_region
          _
        $region16: #{attention_pool_2d.1} parent=11 // pred_fallthru
          _
        // Predicated region
        $region17: #{attention_pool_2d.1} parent=11 // pred_check
          %p143 = pneg %p78
        $region18: #{attention_pool_2d.1} parent=11 // pred_check_branch
          %145 = sbr.rel (%p143) target = $region20
        $region19: #{attention_pool_2d.1} parent=11 // pred_region
          _
        $region20: #{attention_pool_2d.1} parent=11 // pred_fallthru
          _
        // Predicated region
        $region21: #{attention_pool_2d.1} parent=11 // pred_check
          %p146 = pneg %p99
        $region22: #{attention_pool_2d.1} parent=11 // pred_check_branch
          %148 = sbr.rel (%p146) target = $region24
        $region23: #{attention_pool_2d.1} parent=11 // pred_region
          _
        $region24: #{attention_pool_2d.1} parent=11 // pred_fallthru
          _
      $region12: #{attention_pool_2d.1} parent=5 // pred_fallthru
        _
      %p149 = scmp.lt.s32.totalorder %s10, 2
      // Predicated region
      $region25: #{attention_pool_2d.1} parent=5 // pred_check
        %p150 = pneg %p149
      $region26: #{attention_pool_2d.1} parent=5 // pred_check_branch
        %152 = sbr.rel (%p150) target = $region28
      $region27: #{attention_pool_2d.1} parent=5 // pred_region
        // Predicated region
        $region29: #{attention_pool_2d.1} parent=27 // pred_check
          %p153 = pneg %p30
        $region30: #{attention_pool_2d.1} parent=27 // pred_check_branch
          %155 = sbr.rel (%p153) target = $region32
        $region31: #{attention_pool_2d.1} parent=27 // pred_region
          %p156 = scmp.lt.s32.totalorder %s10, 1
          %s157 = scalar_select %p156, %s10, 1
          %s158 = smul.addr %s157, 4
          %s159 = smul.addr %s158, 8
          %s160 = scalar_lea.vmem %s0, %s159
        $region32: #{attention_pool_2d.1} parent=27 // pred_fallthru
          _
      $region28: #{attention_pool_2d.1} parent=5 // pred_fallthru
        _
      %p161 = scmp.le.s32.totalorder 1, %s10
      %p162 = scmp.lt.s32.totalorder %s10, 3
      %p163 = pnand %p161, %p162
      %p164 = pneg %p163
      // Predicated region
      $region33: #{attention_pool_2d.1} parent=5 // pred_check
        _
      $region34: #{attention_pool_2d.1} parent=5 // pred_check_branch
        %166 = sbr.rel (%p163) target = $region36
      $region35: #{attention_pool_2d.1} parent=5 // pred_region
        %s167 = ssub.s32 %s10, 1
        %p168 = scmp.lt.s32.totalorder %s15, 1
        %s169 = scalar_select %p168, %s15, 1
        %s170 = smul.addr %s169, 4
        %s171 = smul.addr %s170, 8
        %s172 = scalar_lea.vmem %s0, %s171
        %p173 = pneg %p36
        %p174 = pneg %p33
        %p175 = pneg %p57
        %p176 = pneg %p54
        %p177 = pneg %p78
        %p178 = pneg %p75
        %p179 = pneg %p99
        %p180 = pneg %p96
        %p181 = pneg %p125
        %p182 = pneg %p122
        %s183 = sand.u32 %s112, 1
        %s184 = sand.u32 %s112, 1
        %s185 = smul.addr %s184, 24
        %s186 = scalar_lea.vmem [#allocation2], %s185
        %p187 = scmp.lt.s32.totalorder %s15, 1
        %s188 = scalar_select %p187, %s15, 1
        %s189 = smul.addr %s188, 4
        %s190 = smul.addr %s189, 8
        %s191 = scalar_lea.vmem %s0, %s190
        %v193 = vld [vmem:[%s191] sm:$0xff]
        %v194 = vld [vmem:[%s191 + $0x8] sm:$0xff]
        %v195 = vld [vmem:[%s191 + $0x10] sm:$0xff]
        %v196 = vld [vmem:[%s191 + $0x18] sm:$0xff]
        %197 = vxpose.xlu0.b32.start [1/16] %v193, 128
        %198 = vxpose.xlu0.b32.cont [2/16] %v194, 128
        %199 = vxpose.xlu0.b32.cont [3/16] %v195, 128
        %200 = vxpose.xlu0.b32.cont [4/16] %v196, 128
        %201 = vxpose.xlu0.b32.cont [5/16] 0.0, 128
        %202 = vxpose.xlu0.b32.cont [6/16] 0.0, 128
        %203 = vxpose.xlu0.b32.cont [7/16] 0.0, 128
        %204 = vxpose.xlu0.b32.cont [8/16] 0.0, 128
        %205 = vxpose.xlu0.b32.cont [9/16] 0.0, 128
        %206 = vxpose.xlu0.b32.cont [10/16] 0.0, 128
        %207 = vxpose.xlu0.b32.cont [11/16] 0.0, 128
        %208 = vxpose.xlu0.b32.cont [12/16] 0.0, 128
        %209 = vxpose.xlu0.b32.cont [13/16] 0.0, 128
        %210 = vxpose.xlu0.b32.cont [14/16] 0.0, 128
        %211 = vxpose.xlu0.b32.cont [15/16] 0.0, 128
        %212 = vxpose.xlu0.b32.end [16/16] 0.0, 128
        %v213 = vpop.trf.xlu0
        %v214 = vpop.trf.xlu0
        %v215 = vpop.trf.xlu0
        %v216 = vpop.trf.xlu0
        %v217 = vpop.trf.xlu0
        %v218 = vpop.trf.xlu0
        %v219 = vpop.trf.xlu0
        %v220 = vpop.trf.xlu0
        %v221 = vpop.trf.xlu0
        %v222 = vpop.trf.xlu0
        %v223 = vpop.trf.xlu0
        %v224 = vpop.trf.xlu0
        %v225 = vpop.trf.xlu0
        %v226 = vpop.trf.xlu0
        %v227 = vpop.trf.xlu0
        %v228 = vpop.trf.xlu0
        %v229 = vpack.c.bf16 %v214, %v213
        %v230 = vld [vmem:[%s1] sm:$0xf]
        %v231 = vld [vmem:[%s1 + $0x4] sm:$0xf]
        %v232 = vld [vmem:[%s1 + $0x8] sm:$0xf]
        %v233 = vld [vmem:[%s1 + $0xc] sm:$0xf]
        %v238 = vunpack.c.l.b16 %v230
        %v239 = vunpack.c.l.b16 %v231
        %v240 = vunpack.c.l.b16 %v232
        %v241 = vunpack.c.l.b16 %v233
        %v242 = vpack.c.b16 %v239, %v238
        %v243 = vpack.c.b16 %v241, %v240
        %vm246 = vcmask 261120
        %v248 = vsel %vm246, %v229, 0
        %250 = vmatprep.subr.bf16.mxu0 0
        %251 = vmatpush1.bf16.msra.mxu0 0
        %252 = vmatprep.subr.bf16.mxu0 0
        %253 = vmatpush1.bf16.msra.mxu0 0
        %254 = vmatprep.subr.bf16.mxu0 0
        %255 = vmatpush1.bf16.msra.mxu0 0
        %256 = vmatprep.subr.bf16.mxu0 0
        %257 = vmatpush1.bf16.msra.mxu0 0
        %258 = vmatprep.subr.bf16.mxu0 0
        %259 = vmatpush1.bf16.msra.mxu0 0
        %260 = vmatprep.subr.bf16.mxu0 0
        %261 = vmatpush1.bf16.msra.mxu0 0
        %262 = vmatprep.subr.bf16.mxu0 0
        %263 = vmatpush1.bf16.msra.mxu0 %v243
        %264 = vmatprep.subr.bf16.mxu0 0
        %265 = vmatpush1.bf16.msra.mxu0 %v242
        %266 = vmatprep.subr.bf16.mxu0 0
        %267 = vmatpush2.bf16.msra.mxu0 0
        %268 = vmatprep.subr.bf16.mxu0 0
        %269 = vmatpush2.bf16.msra.mxu0 0
        %270 = vmatprep.subr.bf16.mxu0 0
        %271 = vmatpush2.bf16.msra.mxu0 0
        %272 = vmatprep.subr.bf16.mxu0 0
        %273 = vmatpush2.bf16.msra.mxu0 0
        %274 = vmatprep.subr.bf16.mxu0 0
        %275 = vmatpush2.bf16.msra.mxu0 0
        %276 = vmatprep.subr.bf16.mxu0 0
        %277 = vmatpush2.bf16.msra.mxu0 0
        %278 = vmatprep.subr.bf16.mxu0 0
        %279 = vmatpush2.bf16.msra.mxu0 0
        %280 = vmatprep.subr.bf16.mxu0 0
        %281 = vmatpush2.bf16.msra.mxu0 0
        %282 = vmatprep.mubr.bf16.mxu0 0
        %283 = vmatmul.mubr.bf16.gmra.mxu0 %v248
        %v284 = vpop.f32.mrf.mxu0
        %v285 = vadd.f32 0.0, %v284
        %v286 = vpop.f32.mrf.mxu0
        %v287 = vpop.f32.mrf.mxu0
        %v288 = vadd.f32 0.0, %v287
        %v289 = vpop.f32.mrf.mxu0
        %290 = vdwg.mxu0
        %v291 = vld [vmem:[%s2] sm:$0x1]
        %v292 = vld [vmem:[%s3] sm:$0xff]
        %v293 = vld [vmem:[%s3 + $0x8] sm:$0xff]
        %v294 = vadd.f32 %v285, %v288
        %v295 = vrot.slane %v294, 4
        %v296 = vadd.f32 %v294, %v295
        %v297 = vrot.slane %v296, 2
        %v298 = vadd.f32 %v296, %v297
        %v299 = vrot.slane %v298, 1
        %v300 = vadd.f32 %v298, %v299
        %v301 = vmul.f32 %v300, 0.0625
        %v302 = vadd.f32 %v301, %v291
        %v303 = vadd.f32 %v285, %v292
        %v304 = vadd.f32 %v288, %v293
        %vm307 = vcmask 1040384
        %v308 = vrot.slane %v303, 7
        %v309 = vrot.slane %v304, 7
        %v310 = vsel %vm307, %v308, %v309
        %v314 = vsel %vm307, %v302, %v308
        %315 = vst [vmem:[%s186] sm:$0xff] %v314
        %316 = vst [vmem:[%s186 + $0x8] sm:$0xff] %v310
        %317 = vst [vmem:[%s186 + $0x10] sm:$0x1] %v309
        %s318 = sand.u32 %s112, 1
        %s319 = sand.u32 %s112, 1
        %s320 = smul.addr %s319, 24
        %s321 = scalar_lea.vmem [#allocation2], %s320
        // Predicated region
        $region37: #{attention_pool_2d.1} parent=35 // pred_check
          %p322 = pneg %p122
        $region38: #{attention_pool_2d.1} parent=35 // pred_check_branch
          %324 = sbr.rel (%p322) target = $region40
        $region39: #{attention_pool_2d.1} parent=35 // pred_region
          %s325 = smul.addr %s15, 8
          %s326 = scalar_lea.vmem %s4, %s325
          // Predicated region
          $region41: #{attention_pool_2d.1} parent=39 // pred_check
            _
          $region42: #{attention_pool_2d.1} parent=39 // pred_check_branch
            %328 = sbr.rel (0) target = $region44
          $region43: #{attention_pool_2d.1} parent=39 // pred_region
            // Predicated region
            $region45: #{attention_pool_2d.1} parent=43 // pred_check
              _
            $region46: #{attention_pool_2d.1} parent=43 // pred_check_branch
              %330 = sbr.rel (0) target = $region48
            $region47: #{attention_pool_2d.1} parent=43 // pred_region
              // Predicated region
              $region60: #{attention_pool_2d.1} parent=47 // pred_check
                _
              $region61: #{attention_pool_2d.1} parent=47 // pred_check_branch
                %350 = sbr.rel (0) target = $region63
              $region62: #{attention_pool_2d.1} parent=47 // pred_region
                loop: start=0, step=1, limit=1
                $region64: #{attention_pool_2d.1} parent=62 // loop_pre_header
                  _
                $region65: #{attention_pool_2d.1} parent=62 // loop_header
                  %s352 = sphi 0, %s356
                  %p353 = scmp.ge.s32.totalorder %s352, 1
                  %s357 = sphi %s321, %s321
                  %s358 = sphi %s326, %s326
                $region66: #{attention_pool_2d.1} parent=62 // loop_header_branch
                  %355 = sbr.rel (%p353) target = $region70
                $region67: #{attention_pool_2d.1} parent=62 // loop_body
                  %v359 = vld [vmem:[%s357] sm:$0xff]
                  %360 = vst [vmem:[%s358] sm:$0xff] %v359
                  %v361 = vld [vmem:[%s357 + $0x8] sm:$0xff]
                  %362 = vst [vmem:[%s358 + $0x10] sm:$0xff] %v361
                  %v363 = vld [vmem:[%s357 + $0x10] sm:$0xff]
                  %364 = vst [vmem:[%s358 + $0x20] sm:$0xff] %v363
                $region68: #{attention_pool_2d.1} parent=62 // loop_footer
                  %s356 = sadd.s32 1, %s352
                $region69: #{attention_pool_2d.1} parent=62 // loop_footer_branch
                  %351 = sbr.rel target = $region65
                $region70: #{attention_pool_2d.1} parent=62 // loop_exit
                  _
              $region63: #{attention_pool_2d.1} parent=47 // pred_fallthru
                _
              // Predicated region
              $region71: #{attention_pool_2d.1} parent=47 // pred_check
                _
              $region72: #{attention_pool_2d.1} parent=47 // pred_check_branch
                %366 = sbr.rel target = $region74
              $region73: #{attention_pool_2d.1} parent=47 // pred_region
                _
              $region74: #{attention_pool_2d.1} parent=47 // pred_fallthru
                _
            $region48: #{attention_pool_2d.1} parent=43 // pred_fallthru
              _
            // Predicated region
            $region49: #{attention_pool_2d.1} parent=43 // pred_check
              _
            $region50: #{attention_pool_2d.1} parent=43 // pred_check_branch
              %332 = sbr.rel target = $region52
            $region51: #{attention_pool_2d.1} parent=43 // pred_region
              %s334 = ssub.s32 256, 1
              loop: start=0, step=1, limit=1
              $region53: #{attention_pool_2d.1} parent=51 // loop_pre_header
                _
              $region54: #{attention_pool_2d.1} parent=51 // loop_header
                %s336 = sphi 0, %s340
                %p337 = scmp.ge.s32.totalorder %s336, 1
                %s341 = sphi %s321, %s321
                %s342 = sphi %s326, %s326
              $region55: #{attention_pool_2d.1} parent=51 // loop_header_branch
                %339 = sbr.rel (%p337) target = $region59
              $region56: #{attention_pool_2d.1} parent=51 // loop_body
                %v343 = vld [vmem:[%s341] sm:%s334]
                %344 = vst [vmem:[%s342] sm:%s334] %v343
                %v345 = vld [vmem:[%s341 + $0x8] sm:%s334]
                %346 = vst [vmem:[%s342 + $0x10] sm:%s334] %v345
                %v347 = vld [vmem:[%s341 + $0x10] sm:%s334]
                %348 = vst [vmem:[%s342 + $0x20] sm:%s334] %v347
              $region57: #{attention_pool_2d.1} parent=51 // loop_footer
                %s340 = sadd.s32 1, %s336
              $region58: #{attention_pool_2d.1} parent=51 // loop_footer_branch
                %335 = sbr.rel target = $region54
              $region59: #{attention_pool_2d.1} parent=51 // loop_exit
                _
            $region52: #{attention_pool_2d.1} parent=43 // pred_fallthru
              _
          $region44: #{attention_pool_2d.1} parent=39 // pred_fallthru
            _
          %367 = vnop
        $region40: #{attention_pool_2d.1} parent=35 // pred_fallthru
          _
      $region36: #{attention_pool_2d.1} parent=5 // pred_fallthru
        _
      %p368 = scmp.le.s32.totalorder 2, %s10
      // Predicated region
      $region75: #{attention_pool_2d.1} parent=5 // pred_check
        %p369 = pneg %p368
      $region76: #{attention_pool_2d.1} parent=5 // pred_check_branch
        %371 = sbr.rel (%p369) target = $region78
      $region77: #{attention_pool_2d.1} parent=5 // pred_region
        %s372 = ssub.s32 %s10, 2
        // Predicated region
        $region79: #{attention_pool_2d.1} parent=77 // pred_check
          %p373 = pneg %p128
        $region80: #{attention_pool_2d.1} parent=77 // pred_check_branch
          %375 = sbr.rel (%p373) target = $region82
        $region81: #{attention_pool_2d.1} parent=77 // pred_region
          %s376 = sand.u32 %s113, 1
          %s377 = sand.u32 %s113, 1
          %s378 = smul.addr %s377, 24
          %s379 = scalar_lea.vmem [#allocation2], %s378
        $region82: #{attention_pool_2d.1} parent=77 // pred_fallthru
          _
      $region78: #{attention_pool_2d.1} parent=5 // pred_fallthru
        _
    $region6: #{attention_pool_2d.1} parent=1 // loop_footer
      %s14 = sadd.s32 1, %s10
    $region7: #{attention_pool_2d.1} parent=1 // loop_footer_branch
      %9 = sbr.rel target = $region3
    $region8: #{attention_pool_2d.1} parent=1 // loop_exit
      _

</llo_original>
